<compile_context>
chip_gen: v6e
topology: v6e:2x2x1
jax: 0.10.0
libtpu: 0.0.40
codegen_flags: <defaults>
</compile_context>

<pallas_src>
import functools

import jax
import jax.numpy as jnp
from jax.experimental import pallas as pl
from jax.experimental.pallas import tpu as pltpu

LANES = 128
SUBLANES = 8
MAX_BLOCK_ROWS = 4096               # 4096*128*4B = 2 MiB per input block
NUM_SPLITS = 2                      # leading 'parallel' axis -> both TCs on v7x
VMEM_LIMIT_BYTES = 32 * 1024 * 1024  # raise v5e's 16 MiB default; <= v7x physical


def _recon_loss_kernel(imgs_ref, coarse_ref, recon_ref, csum_ref, rsum_ref,
                       *, block_rows, inner_steps, total_rows, needs_mask):
    s = pl.program_id(0)   # parallel split (megacore on v7x)
    i = pl.program_id(1)   # sequential steps within the split

    # Initialize this split's resident (1,8,128) output accumulators.
    @pl.when(i == 0)
    def _():
        csum_ref[...] = jnp.zeros_like(csum_ref)
        rsum_ref[...] = jnp.zeros_like(rsum_ref)

    x = imgs_ref[...].astype(jnp.float32)
    c = coarse_ref[...].astype(jnp.float32)
    r = recon_ref[...].astype(jnp.float32)

    dc = jnp.abs(x - c)
    dr = jnp.abs(x - r)

    def accumulate(dc_blk, dr_blk):
        # Fold the block into (8,128) per-lane partial sums with plain VPU adds;
        # the expensive cross-lane reduction is deferred to the wrapper.
        csum_ref[0] += dc_blk.reshape(
            block_rows // SUBLANES, SUBLANES, LANES).sum(axis=0)
        rsum_ref[0] += dr_blk.reshape(
            block_rows // SUBLANES, SUBLANES, LANES).sum(axis=0)

    if needs_mask:  # static (trace-time): tiling does not exactly cover `rows`
        row0 = (s * inner_steps + i) * block_rows
        is_tail = row0 + block_rows > total_rows

        # Fast path: every block except the tail block is fully valid.
        @pl.when(jnp.logical_not(is_tail))
        def _():
            accumulate(dc, dr)

        # Tail block only: zero out rows past the end of the slab.
        @pl.when(is_tail)
        def _():
            rid = jax.lax.broadcasted_iota(
                jnp.int32, (block_rows, LANES), 0) + row0
            valid = rid < total_rows
            accumulate(jnp.where(valid, dc, 0.0), jnp.where(valid, dr, 0.0))
    else:
        accumulate(dc, dr)


def _to_slab(x):
    """Flatten to (rows, 128). Pads (zero) only if n is not lane-aligned."""
    flat = x.reshape(-1)
    n = flat.shape[0]
    rem = n % LANES
    if rem:
        # Rare path: |0-0| = 0, so zero padding never changes the sums.  XLA
        # offers no copy-free lane-dense 2-D view of an unaligned buffer, so
        # this one extra pass only happens when the element count is odd-sized.
        flat = jnp.pad(flat, (0, LANES - rem))
    return flat.reshape(-1, LANES)


def _round_up(x, m):
    return ((x + m - 1) // m) * m


def recon_loss(imgs, coarse_imgs, recon_imgs, masks, c_alpha, r_alpha):
    """Pallas implementation of ReconLoss.forward (masks unused, as in torch)."""
    del masks  # unused by the reference module
    n_elems = imgs.size

    a = _to_slab(imgs)
    b = _to_slab(coarse_imgs)
    c = _to_slab(recon_imgs)

    rows = a.shape[0]
    rows_rounded = _round_up(rows, SUBLANES)

    # Block sizing: as few / as fat blocks as possible (<= MAX_BLOCK_ROWS rows),
    # with block_rows derived from the row count so the coverage overshoot is
    # at most a handful of rows inside the last block (no wasted grid step).
    min_blocks = pl.cdiv(rows_rounded, MAX_BLOCK_ROWS)
    num_splits = NUM_SPLITS if min_blocks >= NUM_SPLITS else 1
    total_blocks = _round_up(min_blocks, num_splits)
    inner_steps = total_blocks // num_splits
    block_rows = _round_up(pl.cdiv(rows_rounded, total_blocks), SUBLANES)
    needs_mask = (total_blocks * block_rows) != rows
    last_block = total_blocks - 1

    def in_map(s, i):
        # Clamp so the DMA source block always starts inside the array (pure
        # safety; with the sizing above every (s, i) maps to a real block).
        return (jnp.minimum(s * inner_steps + i, last_block), 0)

    in_spec = pl.BlockSpec((block_rows, LANES), in_map)
    out_spec = pl.BlockSpec((1, SUBLANES, LANES), lambda s, i: (s, 0, 0))

    bytes_accessed = sum(
        int(t.size) * jnp.dtype(t.dtype).itemsize
        for t in (imgs, coarse_imgs, recon_imgs)
    )
    cost = pl.CostEstimate(
        flops=6 * n_elems,
        transcendentals=0,
        bytes_accessed=bytes_accessed,
    )

    kernel = functools.partial(
        _recon_loss_kernel,
        block_rows=block_rows,
        inner_steps=inner_steps,
        total_rows=rows,
        needs_mask=needs_mask,
    )

    csum, rsum = pl.pallas_call(
        kernel,
        out_shape=(
            jax.ShapeDtypeStruct((num_splits, SUBLANES, LANES), jnp.float32),
            jax.ShapeDtypeStruct((num_splits, SUBLANES, LANES), jnp.float32),
        ),
        grid_spec=pltpu.PrefetchScalarGridSpec(
            num_scalar_prefetch=0,
            grid=(num_splits, inner_steps),
            in_specs=[in_spec, in_spec, in_spec],
            out_specs=[out_spec, out_spec],
        ),
        compiler_params=pltpu.CompilerParams(
            dimension_semantics=("parallel", "arbitrary"),
            vmem_limit_bytes=VMEM_LIMIT_BYTES,
        ),
        cost_estimate=cost,
    )(a, b, c)

    inv_n = jnp.float32(1.0 / n_elems)
    coarse_recon_loss = jnp.float32(c_alpha) * jnp.sum(csum) * inv_n
    fine_recon_loss = jnp.float32(r_alpha) * jnp.sum(rsum) * inv_n
    return coarse_recon_loss, fine_recon_loss


if __name__ == "__main__":
    key = jax.random.PRNGKey(0)
    k1, k2, k3, k4 = jax.random.split(key, 4)

    # NCHW, small shapes
    B, C, H, W = 2, 4, 16, 16
    imgs = jax.random.normal(k1, (B, C, H, W), dtype=jnp.float32)
    coarse_imgs = jax.random.normal(k2, (B, C, H, W), dtype=jnp.float32)
    recon_imgs = jax.random.normal(k3, (B, C, H, W), dtype=jnp.float32)
    masks = (jax.random.uniform(k4, (B, 1, H, W)) > 0.5).astype(jnp.float32)

    c_alpha, r_alpha = 1.2, 1.4  # deterministic hyperparameters

    coarse_loss, fine_loss = recon_loss(
        imgs, coarse_imgs, recon_imgs, masks, c_alpha, r_alpha
    )
    jax.block_until_ready((coarse_loss, fine_loss))

    # reference check (plain JAX)
    ref_c = c_alpha * jnp.mean(jnp.abs(imgs - coarse_imgs))
    ref_f = r_alpha * jnp.mean(jnp.abs(imgs - recon_imgs))
    assert jnp.allclose(coarse_loss, ref_c, rtol=1e-5, atol=1e-6)
    assert jnp.allclose(fine_loss, ref_f, rtol=1e-5, atol=1e-6)

    # Second case: slab rows not a multiple of 8 -> exercises the masked tail
    # block path (pl.when(is_tail)).
    x2 = jax.random.normal(k1, (1, 1, 9, 128), dtype=jnp.float32)
    c2 = jax.random.normal(k2, (1, 1, 9, 128), dtype=jnp.float32)
    r2 = jax.random.normal(k3, (1, 1, 9, 128), dtype=jnp.float32)
    cl2, fl2 = recon_loss(x2, c2, r2, None, 0.7, 0.9)
    jax.block_until_ready((cl2, fl2))
    assert jnp.allclose(cl2, 0.7 * jnp.mean(jnp.abs(x2 - c2)), rtol=1e-5, atol=1e-6)
    assert jnp.allclose(fl2, 0.9 * jnp.mean(jnp.abs(x2 - r2)), rtol=1e-5, atol=1e-6)

    print("KERNEL_OK")
</pallas_src>

<mosaic_0001>
module attributes {stable_mosaic.version = 11 : i64} {
  func.func @_recon_loss_kernel(%arg0: i32, %arg1: i32, %arg2: memref<16x128xf32, #tpu.memory_space<vmem>>, %arg3: memref<16x128xf32, #tpu.memory_space<vmem>>, %arg4: memref<16x128xf32, #tpu.memory_space<vmem>>, %arg5: memref<1x8x128xf32, #tpu.memory_space<vmem>>, %arg6: memref<1x8x128xf32, #tpu.memory_space<vmem>>) attributes {dimension_semantics = [#tpu.dimension_semantics<parallel>, #tpu.dimension_semantics<arbitrary>], iteration_bounds = array<i64: 1, 1>, scalar_prefetch = 0 : i64, scratch_operands = 0 : i64, tpu.core_type = #tpu.core_type<tc>, window_params = [{transform_indices = @transform_0, window_bounds = array<i64: 16, 128>}, {transform_indices = @transform_1, window_bounds = array<i64: 16, 128>}, {transform_indices = @transform_2, window_bounds = array<i64: 16, 128>}, {transform_indices = @transform_3, window_bounds = array<i64: 1, 8, 128>}, {transform_indices = @transform_4, window_bounds = array<i64: 1, 8, 128>}]} {
    %c0_i32 = arith.constant 0 : i32
    %0 = arith.cmpi eq, %arg1, %c0_i32 : i32
    %1 = arith.extui %0 : i1 to i32
    %c0_i32_0 = arith.constant 0 : i32
    %2 = arith.cmpi ne, %1, %c0_i32_0 : i32
    scf.if %2 {
      %cst_19 = arith.constant 0.000000e+00 : f32
      %26 = vector.broadcast %cst_19 : f32 to vector<1x8x128xf32>
      %c0_20 = arith.constant 0 : index
      %c0_21 = arith.constant 0 : index
      %c0_22 = arith.constant 0 : index
      %27 = vector.load %arg5[%c0_20, %c0_21, %c0_22] : memref<1x8x128xf32, #tpu.memory_space<vmem>>, vector<1x8x128xf32>
      tpu.vector_store %arg5[%c0_20, %c0_21, %c0_22], %26 {strides = array<i32>} : memref<1x8x128xf32, #tpu.memory_space<vmem>>, vector<1x8x128xf32>,
      %cst_23 = arith.constant 0.000000e+00 : f32
      %28 = vector.broadcast %cst_23 : f32 to vector<1x8x128xf32>
      %c0_24 = arith.constant 0 : index
      %c0_25 = arith.constant 0 : index
      %c0_26 = arith.constant 0 : index
      %29 = vector.load %arg6[%c0_24, %c0_25, %c0_26] : memref<1x8x128xf32, #tpu.memory_space<vmem>>, vector<1x8x128xf32>
      tpu.vector_store %arg6[%c0_24, %c0_25, %c0_26], %28 {strides = array<i32>} : memref<1x8x128xf32, #tpu.memory_space<vmem>>, vector<1x8x128xf32>,
    } else {
    }
    %c0 = arith.constant 0 : index
    %c0_1 = arith.constant 0 : index
    %3 = vector.load %arg2[%c0, %c0_1] : memref<16x128xf32, #tpu.memory_space<vmem>>, vector<16x128xf32>
    %c0_2 = arith.constant 0 : index
    %c0_3 = arith.constant 0 : index
    %4 = vector.load %arg3[%c0_2, %c0_3] : memref<16x128xf32, #tpu.memory_space<vmem>>, vector<16x128xf32>
    %c0_4 = arith.constant 0 : index
    %c0_5 = arith.constant 0 : index
    %5 = vector.load %arg4[%c0_4, %c0_5] : memref<16x128xf32, #tpu.memory_space<vmem>>, vector<16x128xf32>
    %6 = arith.subf %3, %4 : vector<16x128xf32>
    %7 = math.absf %6 : vector<16x128xf32>
    %8 = arith.subf %3, %5 : vector<16x128xf32>
    %9 = math.absf %8 : vector<16x128xf32>
    %c0_6 = arith.constant 0 : index
    %c0_7 = arith.constant 0 : index
    %c0_8 = arith.constant 0 : index
    %10 = vector.load %arg5[%c0_6, %c0_7, %c0_8] : memref<1x8x128xf32, #tpu.memory_space<vmem>>, vector<1x8x128xf32>
    %11 = vector.shape_cast %10 : vector<1x8x128xf32> to vector<8x128xf32>
    %12 = vector.shape_cast %7 : vector<16x128xf32> to vector<2x8x128xf32>
    %cst = arith.constant dense<0.000000e+00> : vector<8x128xf32>
    %13 = vector.multi_reduction <add>, %12, %cst [0] : vector<2x8x128xf32> to vector<8x128xf32>
    %14 = arith.addf %11, %13 : vector<8x128xf32>
    %c0_9 = arith.constant 0 : index
    %c0_10 = arith.constant 0 : index
    %c0_11 = arith.constant 0 : index
    %15 = vector.load %arg5[%c0_9, %c0_10, %c0_11] : memref<1x8x128xf32, #tpu.memory_space<vmem>>, vector<1x8x128xf32>
    %16 = vector.shape_cast %15 : vector<1x8x128xf32> to vector<8x128xf32>
    %17 = vector.shape_cast %14 : vector<8x128xf32> to vector<1x8x128xf32>
    tpu.vector_store %arg5[%c0_9, %c0_10, %c0_11], %17 {strides = array<i32>} : memref<1x8x128xf32, #tpu.memory_space<vmem>>, vector<1x8x128xf32>,
    %c0_12 = arith.constant 0 : index
    %c0_13 = arith.constant 0 : index
    %c0_14 = arith.constant 0 : index
    %18 = vector.load %arg6[%c0_12, %c0_13, %c0_14] : memref<1x8x128xf32, #tpu.memory_space<vmem>>, vector<1x8x128xf32>
    %19 = vector.shape_cast %18 : vector<1x8x128xf32> to vector<8x128xf32>
    %20 = vector.shape_cast %9 : vector<16x128xf32> to vector<2x8x128xf32>
    %cst_15 = arith.constant dense<0.000000e+00> : vector<8x128xf32>
    %21 = vector.multi_reduction <add>, %20, %cst_15 [0] : vector<2x8x128xf32> to vector<8x128xf32>
    %22 = arith.addf %19, %21 : vector<8x128xf32>
    %c0_16 = arith.constant 0 : index
    %c0_17 = arith.constant 0 : index
    %c0_18 = arith.constant 0 : index
    %23 = vector.load %arg6[%c0_16, %c0_17, %c0_18] : memref<1x8x128xf32, #tpu.memory_space<vmem>>, vector<1x8x128xf32>
    %24 = vector.shape_cast %23 : vector<1x8x128xf32> to vector<8x128xf32>
    %25 = vector.shape_cast %22 : vector<8x128xf32> to vector<1x8x128xf32>
    tpu.vector_store %arg6[%c0_16, %c0_17, %c0_18], %25 {strides = array<i32>} : memref<1x8x128xf32, #tpu.memory_space<vmem>>, vector<1x8x128xf32>,
    return
  }
  func.func @transform_0(%arg0: i32, %arg1: i32) -> (i32, i32) {
    %c1_i32 = arith.constant 1 : i32
    %0 = arith.muli %arg0, %c1_i32 : i32
    %1 = arith.addi %0, %arg1 : i32
    %c0_i32 = arith.constant 0 : i32
    %2 = arith.minsi %1, %c0_i32 : i32
    %c0_i32_0 = arith.constant 0 : i32
    %c0_i32_1 = arith.constant 0 : i32
    return %2, %c0_i32_0 : i32, i32
  }
  func.func @transform_1(%arg0: i32, %arg1: i32) -> (i32, i32) {
    %c1_i32 = arith.constant 1 : i32
    %0 = arith.muli %arg0, %c1_i32 : i32
    %1 = arith.addi %0, %arg1 : i32
    %c0_i32 = arith.constant 0 : i32
    %2 = arith.minsi %1, %c0_i32 : i32
    %c0_i32_0 = arith.constant 0 : i32
    %c0_i32_1 = arith.constant 0 : i32
    return %2, %c0_i32_0 : i32, i32
  }
  func.func @transform_2(%arg0: i32, %arg1: i32) -> (i32, i32) {
    %c1_i32 = arith.constant 1 : i32
    %0 = arith.muli %arg0, %c1_i32 : i32
    %1 = arith.addi %0, %arg1 : i32
    %c0_i32 = arith.constant 0 : i32
    %2 = arith.minsi %1, %c0_i32 : i32
    %c0_i32_0 = arith.constant 0 : i32
    %c0_i32_1 = arith.constant 0 : i32
    return %2, %c0_i32_0 : i32, i32
  }
  func.func @transform_3(%arg0: i32, %arg1: i32) -> (i32, i32, i32) {
    %c0_i32 = arith.constant 0 : i32
    %c0_i32_0 = arith.constant 0 : i32
    %c0_i32_1 = arith.constant 0 : i32
    return %arg0, %c0_i32, %c0_i32_0 : i32, i32, i32
  }
  func.func @transform_4(%arg0: i32, %arg1: i32) -> (i32, i32, i32) {
    %c0_i32 = arith.constant 0 : i32
    %c0_i32_0 = arith.constant 0 : i32
    %c0_i32_1 = arith.constant 0 : i32
    return %arg0, %c0_i32, %c0_i32_0 : i32, i32, i32
  }
}

</mosaic_0001>

<llo_original>
// kernel: tpu_custom_call.1
$region0: #{tpu_custom_call.1}
  #allocation0 [shape = 'u32[]', space=smem, size = 0x4, offset = 0x4, fixed_abs, tag = 'smem constant byte address 0x4 - core index']
  #allocation1 [shape = 'u32[144,128]{1,0:T(1,128)}', space=vmem, size = 0x12000, scoped, tag = 'internal scratch']
  %s0 = inlined_call_operand.hbm [shape: f32[16,128], index: 0, kind: input, shape index: {}]
  %s1 = inlined_call_operand.hbm [shape: f32[16,128], index: 1, kind: input, shape index: {}]
  %s2 = inlined_call_operand.hbm [shape: f32[16,128], index: 2, kind: input, shape index: {}]
  %s3 = inlined_call_operand.hbm [shape: f32[1,8,128], index: 3, kind: output, shape index: {0}]
  %s4 = inlined_call_operand.hbm [shape: f32[1,8,128], index: 4, kind: output, shape index: {1}]
  %5 = xla_tuple %s3, %s4
  %s6 = sld [smem:[#allocation0]]
  $region46: #{tpu_custom_call.1} parent=0
    _
  %s8 = ssub.s32 1, %s6
  %s9 = scalar_select 0, %s8, %s6
  $region1: #{tpu_custom_call.1} parent=0
    #allocation2 [shape = 'u8[8192]{0}', space=vmem, size = 0x2000, scoped, tag = 'input window, operand 0, single buffered']
    #allocation3 [shape = 's32[1]{0}', space=sflag, size = 0x4, scoped, tag = 'scoped memory for tpu_custom_call.1']
    #allocation4 [shape = 's32[1]{0}', space=sflag, size = 0x4, scoped, tag = 'scoped memory for tpu_custom_call.1']
    #allocation5 [shape = 'u8[8192]{0}', space=vmem, size = 0x2000, scoped, tag = 'input window, operand 1, single buffered']
    #allocation6 [shape = 's32[1]{0}', space=sflag, size = 0x4, scoped, tag = 'scoped memory for tpu_custom_call.1']
    #allocation7 [shape = 'u8[8192]{0}', space=vmem, size = 0x2000, scoped, tag = 'input window, operand 2, single buffered']
    #allocation8 [shape = 'u8[4096]{0}', space=vmem, size = 0x1000, scoped, tag = 'output window, operand 0, single buffered']
    #allocation9 [shape = 'u8[4096]{0}', space=vmem, size = 0x1000, scoped, tag = 'output window, operand 1, single buffered']
    #allocation10 [shape = 's32[1]{0}', space=sflag, size = 0x4, scoped, tag = 'scoped memory for tpu_custom_call.1']
    %10 = vsyncpa [#allocation3], 0
    %11 = vsyncpa [#allocation6], 0
    %12 = vsyncpa [#allocation4], 0
    %13 = vsyncpa [#allocation10], 0
    // Predicated region
    $region2: #{tpu_custom_call.1} parent=1 // pred_check
      _
    $region3: #{tpu_custom_call.1} parent=1 // pred_check_branch
      %15 = sbr.rel (0) target = $region5
    $region4: #{tpu_custom_call.1} parent=1 // pred_region
      %s16 = sadd.s32 0, 0
      %p17 = scmp.lt.s32.totalorder %s16, 0
      %s18 = scalar_select %p17, %s16, 0
      %s19 = smul.u32 2, %s18
      %s21 = ssub.s32 256, 256
      %22 = vsyncadd [#allocation3], %s21
      %s23 = smul.addr %s19, 128
      %s24 = scalar_lea.hbm %s0, %s23
      %s25 = sshll.u32 [#allocation2], 4
      %s26 = int_to_ptr.vmem [resolvable:$true] %s25
      %31 = dma.hbm_to_vmem [thread:$0]  %s24, 256, %s26, [#allocation3], 128, 128, 8
    $region5: #{tpu_custom_call.1} parent=1 // pred_fallthru
      _
    // Predicated region
    $region6: #{tpu_custom_call.1} parent=1 // pred_check
      _
    $region7: #{tpu_custom_call.1} parent=1 // pred_check_branch
      %33 = sbr.rel (0) target = $region9
    $region8: #{tpu_custom_call.1} parent=1 // pred_region
      %s34 = sadd.s32 0, 0
      %p35 = scmp.lt.s32.totalorder %s34, 0
      %s36 = scalar_select %p35, %s34, 0
      %s37 = smul.u32 2, %s36
      %s39 = ssub.s32 256, 256
      %40 = vsyncadd [#allocation6], %s39
      %s41 = smul.addr %s37, 128
      %s42 = scalar_lea.hbm %s1, %s41
      %s43 = sshll.u32 [#allocation5], 4
      %s44 = int_to_ptr.vmem [resolvable:$true] %s43
      %49 = dma.hbm_to_vmem [thread:$0]  %s42, 256, %s44, [#allocation6], 128, 128, 8
    $region9: #{tpu_custom_call.1} parent=1 // pred_fallthru
      _
    // Predicated region
    $region10: #{tpu_custom_call.1} parent=1 // pred_check
      _
    $region11: #{tpu_custom_call.1} parent=1 // pred_check_branch
      %51 = sbr.rel (0) target = $region13
    $region12: #{tpu_custom_call.1} parent=1 // pred_region
      %s52 = sadd.s32 0, 0
      %p53 = scmp.lt.s32.totalorder %s52, 0
      %s54 = scalar_select %p53, %s52, 0
      %s55 = smul.u32 2, %s54
      %s57 = ssub.s32 256, 256
      %58 = vsyncadd [#allocation6], %s57
      %s59 = smul.addr %s55, 128
      %s60 = scalar_lea.hbm %s2, %s59
      %s61 = sshll.u32 [#allocation7], 4
      %s62 = int_to_ptr.vmem [resolvable:$true] %s61
      %67 = dma.hbm_to_vmem [thread:$0]  %s60, 256, %s62, [#allocation6], 128, 128, 8
    $region13: #{tpu_custom_call.1} parent=1 // pred_fallthru
      _
    // Predicated region
    $region14: #{tpu_custom_call.1} parent=1 // pred_check
      _
    $region15: #{tpu_custom_call.1} parent=1 // pred_check_branch
      %69 = sbr.rel (0) target = $region17
    $region16: #{tpu_custom_call.1} parent=1 // pred_region
      %70 = dma.done [#allocation3], 256
    $region17: #{tpu_custom_call.1} parent=1 // pred_fallthru
      _
    // Predicated region
    $region18: #{tpu_custom_call.1} parent=1 // pred_check
      _
    $region19: #{tpu_custom_call.1} parent=1 // pred_check_branch
      %72 = sbr.rel (0) target = $region21
    $region20: #{tpu_custom_call.1} parent=1 // pred_region
      %73 = dma.done [#allocation6], 256
    $region21: #{tpu_custom_call.1} parent=1 // pred_fallthru
      _
    // Predicated region
    $region22: #{tpu_custom_call.1} parent=1 // pred_check
      _
    $region23: #{tpu_custom_call.1} parent=1 // pred_check_branch
      %75 = sbr.rel (0) target = $region25
    $region24: #{tpu_custom_call.1} parent=1 // pred_region
      %76 = dma.done [#allocation6], 256
    $region25: #{tpu_custom_call.1} parent=1 // pred_fallthru
      _
    %s77 = sadd.s32 0, 0
    %p78 = scmp.lt.s32.totalorder %s77, 0
    %s79 = scalar_select %p78, %s77, 0
    %s80 = smul.u32 2, %s79
    %s81 = sadd.s32 0, 0
    %p82 = scmp.lt.s32.totalorder %s81, 0
    %s83 = scalar_select %p82, %s81, 0
    %s84 = smul.u32 2, %s83
    %s85 = sadd.s32 0, 0
    %p86 = scmp.lt.s32.totalorder %s85, 0
    %s87 = scalar_select %p86, %s85, 0
    %s88 = smul.u32 2, %s87
    %p89 = scmp.eq.s32.totalorder 0, 0
    // Predicated region
    $region26: #{tpu_custom_call.1} parent=1 // pred_check
      %p90 = pneg %p89
    $region27: #{tpu_custom_call.1} parent=1 // pred_check_branch
      %92 = sbr.rel (%p90) target = $region29
    $region28: #{tpu_custom_call.1} parent=1 // pred_region
      %93 = vst [vmem:[#allocation8] sm:$0xff] 0.0
      %94 = vst [vmem:[#allocation9] sm:$0xff] 0.0
    $region29: #{tpu_custom_call.1} parent=1 // pred_fallthru
      _
    %v95 = vld [vmem:[#allocation2] sm:$0xff]
    %v96 = vld [vmem:[#allocation2 + $0x8] sm:$0xff]
    %v97 = vld [vmem:[#allocation5] sm:$0xff]
    %v98 = vld [vmem:[#allocation5 + $0x8] sm:$0xff]
    %v99 = vld [vmem:[#allocation7] sm:$0xff]
    %v100 = vld [vmem:[#allocation7 + $0x8] sm:$0xff]
    %v101 = vsub.f32 %v95, %v97
    %v102 = vsub.f32 %v96, %v98
    %v103 = vand.u32 2147483647, %v101
    %v104 = vand.u32 2147483647, %v102
    %v105 = vsub.f32 %v95, %v99
    %v106 = vsub.f32 %v96, %v100
    %v107 = vand.u32 2147483647, %v105
    %v108 = vand.u32 2147483647, %v106
    %v109 = vld [vmem:[#allocation8] sm:$0xff]
    %v110 = vadd.f32 %v103, %v104
    %v111 = vadd.f32 %v109, %v110
    %112 = vst [vmem:[#allocation8] sm:$0xff] %v111
    %v113 = vld [vmem:[#allocation9] sm:$0xff]
    %v114 = vadd.f32 %v107, %v108
    %v115 = vadd.f32 %v113, %v114
    %116 = vst [vmem:[#allocation9] sm:$0xff] %v115
    // Predicated region
    $region30: #{tpu_custom_call.1} parent=1 // pred_check
      _
    $region31: #{tpu_custom_call.1} parent=1 // pred_check_branch
      %118 = sbr.rel (0) target = $region33
    $region32: #{tpu_custom_call.1} parent=1 // pred_region
      %s120 = ssub.s32 128, 128
      %121 = vsyncadd [#allocation4], %s120
      %s123 = sshll.u32 [#allocation8], 4
      %s124 = int_to_ptr.vmem [resolvable:$true] %s123
      %126 = dma.vmem_to_hbm [thread:$0]  %s124, 128, %s3, [#allocation4]
    $region33: #{tpu_custom_call.1} parent=1 // pred_fallthru
      _
    // Predicated region
    $region34: #{tpu_custom_call.1} parent=1 // pred_check
      _
    $region35: #{tpu_custom_call.1} parent=1 // pred_check_branch
      %128 = sbr.rel (0) target = $region37
    $region36: #{tpu_custom_call.1} parent=1 // pred_region
      %s130 = ssub.s32 128, 128
      %131 = vsyncadd [#allocation10], %s130
      %s133 = sshll.u32 [#allocation9], 4
      %s134 = int_to_ptr.vmem [resolvable:$true] %s133
      %136 = dma.vmem_to_hbm [thread:$0]  %s134, 128, %s4, [#allocation10]
    $region37: #{tpu_custom_call.1} parent=1 // pred_fallthru
      _
    // Predicated region
    $region38: #{tpu_custom_call.1} parent=1 // pred_check
      _
    $region39: #{tpu_custom_call.1} parent=1 // pred_check_branch
      %138 = sbr.rel (0) target = $region41
    $region40: #{tpu_custom_call.1} parent=1 // pred_region
      %139 = dma.done [#allocation4], 128
    $region41: #{tpu_custom_call.1} parent=1 // pred_fallthru
      _
    // Predicated region
    $region42: #{tpu_custom_call.1} parent=1 // pred_check
      _
    $region43: #{tpu_custom_call.1} parent=1 // pred_check_branch
      %141 = sbr.rel (0) target = $region45
    $region44: #{tpu_custom_call.1} parent=1 // pred_region
      %142 = dma.done [#allocation10], 128
    $region45: #{tpu_custom_call.1} parent=1 // pred_fallthru
      _
    %143 = vsyncpa [#allocation3], 1
    %144 = vsyncpa [#allocation6], 1
    %145 = vsyncpa [#allocation4], 1
    %146 = vsyncpa [#allocation10], 1

</llo_original>
